<compile_context>
chip_gen: v7x
topology: tpu7x:2x2x1
jax: 0.10.0
libtpu: 0.0.40
codegen_flags: <defaults>
</compile_context>

<pallas_src>
import functools

import jax
import jax.numpy as jnp
from jax.experimental import pallas as pl
from jax.experimental.pallas import tpu as pltpu


def _round_up(x, m):
    return ((x + m - 1) // m) * m


def _shift_conv1x1_kernel(x_cur_ref, x_nxt_ref, x_prv_ref, w_ref, b_ref,
                          o_ref, *, fold, c_narrow):
    """One (hw-tile, batch, frame) grid step, NCHW layout.

    x_cur_ref : (1, 1, C,        HW_TILE)  frame t
    x_nxt_ref : (1, 1, c_narrow, HW_TILE)  frame min(t+1, T-1) (first channels)
    x_prv_ref : (1, 1, c_narrow, HW_TILE)  frame max(t-1, 0)   (first channels)
    w_ref     : (Cout, C)    b_ref : (Cout, 1)
    o_ref     : (1, 1, Cout, HW_TILE)
    """
    t = pl.program_id(2)
    num_t = pl.num_programs(2)

    x_cur = x_cur_ref[0, 0]                      # (C, HWT), channels on sublanes
    x_nxt = x_nxt_ref[0, 0]                      # (c_narrow, HWT)
    x_prv = x_prv_ref[0, 0]

    c_full = x_cur.shape[0]
    head_cur = x_cur[:c_narrow] if c_narrow < c_full else x_cur

    # Channel (sublane) index decides which temporal source each channel uses.
    c_idx = jax.lax.broadcasted_iota(jnp.int32, (c_narrow, x_cur.shape[1]), 0)
    in_a = c_idx < fold                                      # take frame t+1
    in_b = jnp.logical_and(c_idx >= fold, c_idx < 2 * fold)  # take frame t-1

    # Nested, mutually-exclusive selects on the narrow head only; sequence
    # edges (t==0 / t==T-1) are zeroed with scalar predicates.
    head = jnp.where(in_a, jnp.where(t < num_t - 1, x_nxt, 0.0),
           jnp.where(in_b, jnp.where(t > 0,        x_prv, 0.0), head_cur))

    if c_narrow < c_full:
        # Channels >= c_narrow are never shifted: splice the untouched tail of
        # the current frame back on (sublane-aligned, cheap VMEM copy).
        shifted = jnp.concatenate([head, x_cur[c_narrow:]], axis=0)
    else:
        shifted = head

    # Single full-K MXU matmul, f32 accumulation; bias folded into the epilogue.
    acc = jnp.dot(w_ref[...], shifted, preferred_element_type=jnp.float32)
    o_ref[0, 0] = (acc + b_ref[...]).astype(o_ref.dtype)


def _pick_hw_tile(hw, c, c_narrow, cout, itemsize, budget_bytes=12 << 20):
    """Choose a lane tile (multiple of 128) for the HW axis.

    Budget covers the double-buffered x(cur/nxt/prv) + out blocks PLUS the
    double-buffered weight/bias buffers, and is kept under the smallest default
    scoped-VMEM limit (16 MiB on v5e; 32 MiB on v6e/v7x).  Returns
    (hw_tile, hw_padded); HW is padded up to a multiple of the tile so the
    output stores stay lane-dense (<=10% padding allowed in exchange for a
    larger tile)."""
    per_col = 2 * (c + 2 * c_narrow + cout) * itemsize          # blocks, 2-buf
    wb = 2 * (cout * c + cout) * itemsize                       # weight+bias, 2-buf
    avail = max(budget_bytes - wb, 1 << 20)
    cap = max(128, min(2048, (avail // per_col) // 128 * 128))
    minpad = _round_up(hw, 128)
    cap = min(cap, minpad)
    best = 128
    t = 128
    while t <= cap:
        if _round_up(hw, t) * 10 <= minpad * 11:                 # <=10% extra pad
            best = t
        t += 128
    return best, _round_up(hw, best)


def temporal_shift_conv1x1(x_nchw, weight, bias, *, n_segment, fold_div,
                           compute_dtype=None):
    """TemporalShift(net=Conv2d 1x1).forward.

    x_nchw : (NT, C, H, W), NT = n_batch * n_segment
    weight : (Cout, Cin)  (torch Conv2d weight with the 1x1 dims squeezed)
    bias   : (Cout,)
    compute_dtype : optional narrow dtype (e.g. jnp.bfloat16) for x/weight;
                    accumulation stays f32, output keeps the input dtype.
    """
    nt, c, h, w = x_nchw.shape
    assert nt % n_segment == 0
    n_batch = nt // n_segment
    cout, cin = weight.shape
    assert cin == c
    fold = c // fold_div
    hw = h * w

    out_dtype = x_nchw.dtype
    if compute_dtype is not None:
        x_nchw = x_nchw.astype(compute_dtype)
        weight = weight.astype(compute_dtype)
    bias2 = bias.astype(jnp.float32).reshape(cout, 1)

    # Narrow channel prefix fetched for the nxt/prv streams (the shift only
    # touches the first 2*fold channels); rounded up to 32 sublanes so the
    # block is tile-aligned for both f32 and bf16.
    c_narrow = min(c, _round_up(max(2 * fold, 1), 32))

    itemsize = x_nchw.dtype.itemsize
    hw_tile, hw_pad = _pick_hw_tile(hw, c, c_narrow, cout, itemsize)

    # Free reshape: (NT, C, H, W) -> (nb, T, C, HW), still NCHW / contiguous.
    x = x_nchw.reshape(n_batch, n_segment, c, hw)
    if hw_pad != hw:
        x = jnp.pad(x, ((0, 0), (0, 0), (0, 0), (0, hw_pad - hw)))

    num_s = hw_pad // hw_tile
    # hw-tiles lead so the megacore-partitioned axis has a useful extent on v7x
    # even when n_batch == 1.
    grid = (num_s, n_batch, n_segment)
    last_t = n_segment - 1

    cur_spec = pl.BlockSpec((1, 1, c, hw_tile),
                            lambda s, b, t: (b, t, 0, s))
    nxt_spec = pl.BlockSpec((1, 1, c_narrow, hw_tile),
                            lambda s, b, t: (b, jnp.minimum(t + 1, last_t), 0, s))
    prv_spec = pl.BlockSpec((1, 1, c_narrow, hw_tile),
                            lambda s, b, t: (b, jnp.maximum(t - 1, 0), 0, s))
    w_spec = pl.BlockSpec((cout, c), lambda s, b, t: (0, 0))
    b_spec = pl.BlockSpec((cout, 1), lambda s, b, t: (0, 0))
    o_spec = pl.BlockSpec((1, 1, cout, hw_tile), lambda s, b, t: (b, t, 0, s))

    # Only raise the scoped-VMEM limit when the (double-buffered) weight forces
    # the working set past the default limits; otherwise leave defaults alone.
    est_vmem = (hw_tile * 2 * (c + 2 * c_narrow + cout) * itemsize
                + 2 * (cout * c + cout) * itemsize + (1 << 20))
    cp_kwargs = dict(dimension_semantics=("parallel", "parallel", "parallel"))
    if est_vmem > (14 << 20):
        cp_kwargs["vmem_limit_bytes"] = int(min(est_vmem * 1.2, 100 << 20))

    kernel = functools.partial(_shift_conv1x1_kernel, fold=fold,
                               c_narrow=c_narrow)
    out = pl.pallas_call(
        kernel,
        out_shape=jax.ShapeDtypeStruct(
            (n_batch, n_segment, cout, hw_pad), out_dtype),
        grid_spec=pltpu.PrefetchScalarGridSpec(
            num_scalar_prefetch=0,
            grid=grid,
            in_specs=[cur_spec, nxt_spec, prv_spec, w_spec, b_spec],
            out_specs=o_spec,
        ),
        compiler_params=pltpu.CompilerParams(**cp_kwargs),
    )(x, x, x, weight, bias2)

    if hw_pad != hw:
        out = out[..., :hw]
    return out.reshape(nt, cout, h, w)


def _reference(x, weight, bias, n_segment, fold_div):
    """Pure-JAX reference matching the PyTorch module exactly (NCHW)."""
    nt, c, h, w = x.shape
    nb = nt // n_segment
    fold = c // fold_div
    xr = x.reshape(nb, n_segment, c, h, w)
    out = jnp.zeros_like(xr)
    out = out.at[:, :-1, :fold].set(xr[:, 1:, :fold])
    out = out.at[:, 1:, fold:2 * fold].set(xr[:, :-1, fold:2 * fold])
    out = out.at[:, :, 2 * fold:].set(xr[:, :, 2 * fold:])
    out = out.reshape(nt, c, h, w)
    # weight stored as (Cout, Cin), i.e. torch Conv2d weight[..., 0, 0].
    return jnp.einsum('nchw,dc->ndhw', out, weight) + bias[None, :, None, None]


if __name__ == "__main__":
    fold_div = 8
    key = jax.random.PRNGKey(0)

    # --- Test A: f32, C=32 (narrow stream == full C), tight tolerance. -------
    n_segment, n_batch = 3, 2
    NT, C, H, W = n_batch * n_segment, 32, 16, 16
    k1, k2, k3, key = jax.random.split(key, 4)
    x = jax.random.normal(k1, (NT, C, H, W), dtype=jnp.float32)
    wgt = jax.random.normal(k2, (C, C), dtype=jnp.float32) * 0.05
    b = jax.random.normal(k3, (C,), dtype=jnp.float32) * 0.1

    y = jax.block_until_ready(
        temporal_shift_conv1x1(x, wgt, b, n_segment=n_segment,
                               fold_div=fold_div))
    y_ref = _reference(x, wgt, b, n_segment, fold_div)
    assert y.shape == (NT, C, H, W), y.shape
    assert jnp.allclose(y, y_ref, atol=1e-4, rtol=1e-4), \
        float(jnp.max(jnp.abs(y - y_ref)))

    # --- Test B: bf16 compute, C=128 (exercises the narrow nxt/prv streams,
    #     the sublane splice, and HW lane-padding: 15*15 -> 256). -------------
    n_segment2, n_batch2 = 4, 2
    NT2, C2, H2, W2 = n_batch2 * n_segment2, 128, 15, 15
    k1, k2, k3, key = jax.random.split(key, 4)
    x2 = jax.random.normal(k1, (NT2, C2, H2, W2), dtype=jnp.float32)
    w2 = jax.random.normal(k2, (C2, C2), dtype=jnp.float32) * 0.05
    b2 = jax.random.normal(k3, (C2,), dtype=jnp.float32) * 0.1

    y2 = jax.block_until_ready(
        temporal_shift_conv1x1(x2, w2, b2, n_segment=n_segment2,
                               fold_div=fold_div,
                               compute_dtype=jnp.bfloat16))
    y2_ref = _reference(x2, w2, b2, n_segment2, fold_div)
    assert y2.shape == (NT2, C2, H2, W2), y2.shape
    assert jnp.allclose(y2, y2_ref, atol=1e-1, rtol=1e-1), \
        float(jnp.max(jnp.abs(y2 - y2_ref)))

    print("KERNEL_OK")
</pallas_src>

<mosaic_0001>
module attributes {stable_mosaic.version = 11 : i64} {
  func.func @_shift_conv1x1_kernel(%arg0: i32, %arg1: i32, %arg2: i32, %arg3: memref<1x1x32x256xf32, #tpu.memory_space<vmem>>, %arg4: memref<1x1x32x256xf32, #tpu.memory_space<vmem>>, %arg5: memref<1x1x32x256xf32, #tpu.memory_space<vmem>>, %arg6: memref<32x32xf32, #tpu.memory_space<vmem>>, %arg7: memref<32x1xf32, #tpu.memory_space<vmem>>, %arg8: memref<1x1x32x256xf32, #tpu.memory_space<vmem>>) attributes {dimension_semantics = [#tpu.dimension_semantics<parallel>, #tpu.dimension_semantics<parallel>, #tpu.dimension_semantics<parallel>], iteration_bounds = array<i64: 1, 2, 3>, scalar_prefetch = 0 : i64, scratch_operands = 0 : i64, tpu.core_type = #tpu.core_type<tc>, window_params = [{transform_indices = @transform_0, window_bounds = array<i64: 1, 1, 32, 256>}, {transform_indices = @transform_1, window_bounds = array<i64: 1, 1, 32, 256>}, {transform_indices = @transform_2, window_bounds = array<i64: 1, 1, 32, 256>}, {pipeline_mode = #tpu.pipeline_mode<synchronous>, transform_indices = @transform_3, window_bounds = array<i64: 32, 32>}, {pipeline_mode = #tpu.pipeline_mode<synchronous>, transform_indices = @transform_4, window_bounds = array<i64: 32, 1>}, {transform_indices = @transform_5, window_bounds = array<i64: 1, 1, 32, 256>}]} {
    %c0 = arith.constant 0 : index
    %c0_0 = arith.constant 0 : index
    %c0_1 = arith.constant 0 : index
    %c0_2 = arith.constant 0 : index
    %0 = vector.load %arg3[%c0, %c0_0, %c0_1, %c0_2] : memref<1x1x32x256xf32, #tpu.memory_space<vmem>>, vector<1x1x32x256xf32>
    %1 = vector.shape_cast %0 : vector<1x1x32x256xf32> to vector<32x256xf32>
    %c0_3 = arith.constant 0 : index
    %c0_4 = arith.constant 0 : index
    %c0_5 = arith.constant 0 : index
    %c0_6 = arith.constant 0 : index
    %2 = vector.load %arg4[%c0_3, %c0_4, %c0_5, %c0_6] : memref<1x1x32x256xf32, #tpu.memory_space<vmem>>, vector<1x1x32x256xf32>
    %3 = vector.shape_cast %2 : vector<1x1x32x256xf32> to vector<32x256xf32>
    %c0_7 = arith.constant 0 : index
    %c0_8 = arith.constant 0 : index
    %c0_9 = arith.constant 0 : index
    %c0_10 = arith.constant 0 : index
    %4 = vector.load %arg5[%c0_7, %c0_8, %c0_9, %c0_10] : memref<1x1x32x256xf32, #tpu.memory_space<vmem>>, vector<1x1x32x256xf32>
    %5 = vector.shape_cast %4 : vector<1x1x32x256xf32> to vector<32x256xf32>
    %6 = tpu.iota {dimensions = array<i32: 0>} : vector<32x256xi32>
    %c4_i32 = arith.constant 4 : i32
    %7 = vector.broadcast %c4_i32 : i32 to vector<32x256xi32>
    %8 = arith.cmpi slt, %6, %7 : vector<32x256xi32>
    %c4_i32_11 = arith.constant 4 : i32
    %9 = vector.broadcast %c4_i32_11 : i32 to vector<32x256xi32>
    %10 = arith.cmpi sge, %6, %9 : vector<32x256xi32>
    %c8_i32 = arith.constant 8 : i32
    %11 = vector.broadcast %c8_i32 : i32 to vector<32x256xi32>
    %12 = arith.cmpi slt, %6, %11 : vector<32x256xi32>
    %13 = arith.andi %10, %12 : vector<32x256xi1>
    %c2_i32 = arith.constant 2 : i32
    %14 = arith.cmpi slt, %arg2, %c2_i32 : i32
    %cst = arith.constant 0.000000e+00 : f32
    %15 = vector.broadcast %cst : f32 to vector<32x256xf32>
    %16 = arith.select %14, %3, %15 : vector<32x256xf32>
    %c0_i32 = arith.constant 0 : i32
    %17 = arith.cmpi sgt, %arg2, %c0_i32 : i32
    %cst_12 = arith.constant 0.000000e+00 : f32
    %18 = vector.broadcast %cst_12 : f32 to vector<32x256xf32>
    %19 = arith.select %17, %5, %18 : vector<32x256xf32>
    %20 = arith.select %13, %19, %1 : vector<32x256xi1>, vector<32x256xf32>
    %21 = arith.select %8, %16, %20 : vector<32x256xi1>, vector<32x256xf32>
    %c0_13 = arith.constant 0 : index
    %c0_14 = arith.constant 0 : index
    %22 = vector.load %arg6[%c0_13, %c0_14] : memref<32x32xf32, #tpu.memory_space<vmem>>, vector<32x32xf32>
    %cst_15 = arith.constant dense<0.000000e+00> : vector<32x256xf32>
    %23 = tpu.matmul %22, %21, %cst_15 {dimension_numbers = #tpu.dot_dimension_numbers<[1], [0], [0], [1], [0, 0, 1, 1], [], []>} : vector<32x32xf32>, vector<32x256xf32>, vector<32x256xf32> -> vector<32x256xf32>
    %c0_16 = arith.constant 0 : index
    %c0_17 = arith.constant 0 : index
    %24 = vector.load %arg7[%c0_16, %c0_17] : memref<32x1xf32, #tpu.memory_space<vmem>>, vector<32x1xf32>
    %25 = vector.broadcast %24 : vector<32x1xf32> to vector<32x256xf32>
    %26 = arith.addf %23, %25 : vector<32x256xf32>
    %c0_18 = arith.constant 0 : index
    %c0_19 = arith.constant 0 : index
    %c0_20 = arith.constant 0 : index
    %c0_21 = arith.constant 0 : index
    %27 = vector.load %arg8[%c0_18, %c0_19, %c0_20, %c0_21] : memref<1x1x32x256xf32, #tpu.memory_space<vmem>>, vector<1x1x32x256xf32>
    %28 = vector.shape_cast %27 : vector<1x1x32x256xf32> to vector<32x256xf32>
    %29 = vector.shape_cast %26 : vector<32x256xf32> to vector<1x1x32x256xf32>
    tpu.vector_store %arg8[%c0_18, %c0_19, %c0_20, %c0_21], %29 {strides = array<i32>} : memref<1x1x32x256xf32, #tpu.memory_space<vmem>>, vector<1x1x32x256xf32>,
    return
  }
  func.func @transform_0(%arg0: i32, %arg1: i32, %arg2: i32) -> (i32, i32, i32, i32) {
    %c0_i32 = arith.constant 0 : i32
    %c0_i32_0 = arith.constant 0 : i32
    return %arg1, %arg2, %c0_i32, %arg0 : i32, i32, i32, i32
  }
  func.func @transform_1(%arg0: i32, %arg1: i32, %arg2: i32) -> (i32, i32, i32, i32) {
    %c1_i32 = arith.constant 1 : i32
    %0 = arith.addi %arg2, %c1_i32 : i32
    %c2_i32 = arith.constant 2 : i32
    %1 = arith.minsi %0, %c2_i32 : i32
    %c0_i32 = arith.constant 0 : i32
    %c0_i32_0 = arith.constant 0 : i32
    return %arg1, %1, %c0_i32, %arg0 : i32, i32, i32, i32
  }
  func.func @transform_2(%arg0: i32, %arg1: i32, %arg2: i32) -> (i32, i32, i32, i32) {
    %c1_i32 = arith.constant 1 : i32
    %0 = arith.subi %arg2, %c1_i32 : i32
    %c0_i32 = arith.constant 0 : i32
    %1 = arith.maxsi %0, %c0_i32 : i32
    %c0_i32_0 = arith.constant 0 : i32
    %c0_i32_1 = arith.constant 0 : i32
    return %arg1, %1, %c0_i32_0, %arg0 : i32, i32, i32, i32
  }
  func.func @transform_3(%arg0: i32, %arg1: i32, %arg2: i32) -> (i32, i32) {
    %c0_i32 = arith.constant 0 : i32
    %c0_i32_0 = arith.constant 0 : i32
    %c0_i32_1 = arith.constant 0 : i32
    return %c0_i32, %c0_i32_0 : i32, i32
  }
  func.func @transform_4(%arg0: i32, %arg1: i32, %arg2: i32) -> (i32, i32) {
    %c0_i32 = arith.constant 0 : i32
    %c0_i32_0 = arith.constant 0 : i32
    %c0_i32_1 = arith.constant 0 : i32
    return %c0_i32, %c0_i32_0 : i32, i32
  }
  func.func @transform_5(%arg0: i32, %arg1: i32, %arg2: i32) -> (i32, i32, i32, i32) {
    %c0_i32 = arith.constant 0 : i32
    %c0_i32_0 = arith.constant 0 : i32
    return %arg1, %arg2, %c0_i32, %arg0 : i32, i32, i32, i32
  }
}

</mosaic_0001>

<llo_original>
// kernel: tpu_custom_call.1
$region0: #{tpu_custom_call.1}
  #allocation0 [shape = 'u32[]', space=smem, size = 0x4, offset = 0x4, fixed_abs, tag = 'smem constant byte address 0x4 - core index']
  #allocation1 [shape = 'u32[144,128]{1,0:T(1,128)}', space=vmem, size = 0x12000, scoped, tag = 'internal scratch']
  %s0 = inlined_call_operand.hbm [shape: f32[2,3,32,256], index: 0, kind: input, shape index: {}]
  %s1 = inlined_call_operand.hbm [shape: f32[2,3,32,256], index: 1, kind: input, shape index: {}]
  %s2 = inlined_call_operand.hbm [shape: f32[2,3,32,256], index: 2, kind: input, shape index: {}]
  %s3 = inlined_call_operand.vmem [shape: f32[32,32], index: 3, kind: input, shape index: {}]
  %s4 = inlined_call_operand.vmem [shape: f32[32,1], index: 4, kind: input, shape index: {}]
  %s5 = inlined_call_operand.hbm [shape: f32[2,3,32,256], index: 5, kind: output, shape index: {}]
  %s6 = sld [smem:[#allocation0]]
  $region65: #{tpu_custom_call.1} parent=0
    _
  %s8 = ssub.s32 1, %s6
  %s9 = scalar_select 0, %s8, %s6
  $region1: #{tpu_custom_call.1} parent=0
    #allocation2 [shape = 'u8[65536]{0}', space=vmem, size = 0x10000, scoped, tag = 'input window, operand 0']
    #allocation3 [shape = 's32[2]{0}', space=sflag, size = 0x8, scoped, tag = 'scoped memory for tpu_custom_call.1']
    #allocation4 [shape = 's32[2]{0}', space=sflag, size = 0x8, scoped, tag = 'scoped memory for tpu_custom_call.1']
    #allocation5 [shape = 'u8[65536]{0}', space=vmem, size = 0x10000, scoped, tag = 'input window, operand 1']
    #allocation6 [shape = 's32[2]{0}', space=sflag, size = 0x8, scoped, tag = 'scoped memory for tpu_custom_call.1']
    #allocation7 [shape = 'u8[65536]{0}', space=vmem, size = 0x10000, scoped, tag = 'input window, operand 2']
    #allocation8 [shape = 'u8[65536]{0}', space=vmem, size = 0x10000, scoped, tag = 'output window, operand 0']
    %10 = vsyncpa [#allocation3], 0
    %s11 = scalar_lea.sflag [#allocation3], 1
    %12 = vsyncpa %s11, 0
    %13 = vsyncpa [#allocation6], 0
    %s14 = scalar_lea.sflag [#allocation6], 1
    %15 = vsyncpa %s14, 0
    %16 = vsyncpa [#allocation4], 0
    %s17 = scalar_lea.sflag [#allocation4], 1
    %18 = vsyncpa %s17, 0
    loop: start=0, step=1, limit=8
    $region2: #{tpu_custom_call.1} parent=1 // loop_pre_header
      _
    $region3: #{tpu_custom_call.1} parent=1 // loop_header
      %s20 = sphi 0, %s24
      %p21 = scmp.ge.s32.totalorder %s20, 8
      %s27 = sphi 0, %s46
      %s28 = sphi 0, %s42
      %s29 = sphi 0, %s38
      %s30 = sphi 0, %s27
      %s31 = sphi 0, %s28
      %s32 = sphi 0, %s29
      %s33 = sphi 0, %s30
      %s34 = sphi 0, %s31
      %s35 = sphi 0, %s32
      %s53 = sphi 0, %s55
      %s56 = sphi 0, %s53
      %s57 = sphi 0, %s56
      %s73 = sphi 0, %s57
      %s89 = sphi 0, %s91
      %s92 = sphi 0, %s89
      %s93 = sphi 0, %s92
      %s109 = sphi 0, %s93
      %s125 = sphi 0, %s127
      %s128 = sphi 0, %s125
      %s129 = sphi 0, %s128
      %s145 = sphi 0, %s129
      %s149 = sphi 0, %s149
      %s151 = sphi 0, %s149
      %s152 = sphi 0, %s151
      %s166 = sphi 0, %s152
      %s170 = sphi 0, %s170
      %s172 = sphi 0, %s170
      %s173 = sphi 0, %s172
      %s187 = sphi 0, %s173
      %s197 = sphi 0, %s199
      %s200 = sphi 0, %s197
      %s201 = sphi 0, %s200
      %s217 = sphi 0, %s201
    $region4: #{tpu_custom_call.1} parent=1 // loop_header_branch
      %23 = sbr.rel (%p21) target = $region8
    $region5: #{tpu_custom_call.1} parent=1 // loop_body
      %s25 = ssub.s32 %s20, 1
      %s26 = ssub.s32 %s20, 2
      %s36 = sadd.s32 1, %s29
      %p37 = scmp.ge.s32.totalorder %s36, 3
      %s38 = scalar_select %p37, 0, %s36
      %s39 = sadd.s32 1, %s28
      %s40 = scalar_select %p37, %s39, %s28
      %p41 = scmp.ge.s32.totalorder %s40, 2
      %s42 = scalar_select %p41, 0, %s40
      %s43 = sadd.s32 1, %s27
      %s44 = scalar_select %p41, %s43, %s27
      %p45 = scmp.ge.s32.totalorder %s44, 1
      %s46 = scalar_select %p45, 0, %s44
      %s47 = ssub.s32 %s28, %s42
      %s48 = ssub.s32 %s29, %s38
      %s49 = sor.u32 %s47, %s48
      %s50 = ssub.s32 %s27, %s46
      %s51 = sor.u32 %s49, %s50
      %p52 = scmp.eq.s32.totalorder %s51, 0
      %s54 = sadd.s32 %s53, 1
      %s55 = scalar_select %p52, %s53, %s54
      %p58 = pneg %p52
      %p59 = scmp.eq.s32.totalorder %s20, 5
      %p60 = por %p58, %p59
      %p61 = scmp.ne.s32.totalorder %s53, %s56
      %p62 = scmp.eq.s32.totalorder %s20, 0
      %p63 = por %p61, %p62
      %p64 = scmp.ne.s32.totalorder %s53, %s56
      %p65 = scmp.eq.s32.totalorder %s25, 5
      %p66 = por %p64, %p65
      %p67 = scmp.ne.s32.totalorder %s56, %s57
      %p68 = scmp.eq.s32.totalorder %s25, 0
      %p69 = por %p67, %p68
      %p70 = scmp.ne.s32.totalorder %s56, %s57
      %p71 = scmp.eq.s32.totalorder %s26, 5
      %p72 = por %p70, %p71
      %p74 = scmp.ne.s32.totalorder %s57, %s73
      %p75 = scmp.eq.s32.totalorder %s26, 0
      %p76 = por %p74, %p75
      %s77 = sadd.s32 %s29, 1
      %p78 = scmp.lt.s32.totalorder %s77, 2
      %s79 = scalar_select %p78, %s77, 2
      %s80 = sadd.s32 %s38, 1
      %p81 = scmp.lt.s32.totalorder %s80, 2
      %s82 = scalar_select %p81, %s80, 2
      %s83 = ssub.s32 %s28, %s42
      %s84 = ssub.s32 %s79, %s82
      %s85 = sor.u32 %s83, %s84
      %s86 = ssub.s32 %s27, %s46
      %s87 = sor.u32 %s85, %s86
      %p88 = scmp.eq.s32.totalorder %s87, 0
      %s90 = sadd.s32 %s89, 1
      %s91 = scalar_select %p88, %s89, %s90
      %p94 = pneg %p88
      %p95 = scmp.eq.s32.totalorder %s20, 5
      %p96 = por %p94, %p95
      %p97 = scmp.ne.s32.totalorder %s89, %s92
      %p98 = scmp.eq.s32.totalorder %s20, 0
      %p99 = por %p97, %p98
      %p100 = scmp.ne.s32.totalorder %s89, %s92
      %p101 = scmp.eq.s32.totalorder %s25, 5
      %p102 = por %p100, %p101
      %p103 = scmp.ne.s32.totalorder %s92, %s93
      %p104 = scmp.eq.s32.totalorder %s25, 0
      %p105 = por %p103, %p104
      %p106 = scmp.ne.s32.totalorder %s92, %s93
      %p107 = scmp.eq.s32.totalorder %s26, 5
      %p108 = por %p106, %p107
      %p110 = scmp.ne.s32.totalorder %s93, %s109
      %p111 = scmp.eq.s32.totalorder %s26, 0
      %p112 = por %p110, %p111
      %s113 = ssub.s32 %s29, 1
      %p114 = scmp.gt.s32.totalorder %s113, 0
      %s115 = scalar_select %p114, %s113, 0
      %s116 = ssub.s32 %s38, 1
      %p117 = scmp.gt.s32.totalorder %s116, 0
      %s118 = scalar_select %p117, %s116, 0
      %s119 = ssub.s32 %s28, %s42
      %s120 = ssub.s32 %s115, %s118
      %s121 = sor.u32 %s119, %s120
      %s122 = ssub.s32 %s27, %s46
      %s123 = sor.u32 %s121, %s122
      %p124 = scmp.eq.s32.totalorder %s123, 0
      %s126 = sadd.s32 %s125, 1
      %s127 = scalar_select %p124, %s125, %s126
      %p130 = pneg %p124
      %p131 = scmp.eq.s32.totalorder %s20, 5
      %p132 = por %p130, %p131
      %p133 = scmp.ne.s32.totalorder %s125, %s128
      %p134 = scmp.eq.s32.totalorder %s20, 0
      %p135 = por %p133, %p134
      %p136 = scmp.ne.s32.totalorder %s125, %s128
      %p137 = scmp.eq.s32.totalorder %s25, 5
      %p138 = por %p136, %p137
      %p139 = scmp.ne.s32.totalorder %s128, %s129
      %p140 = scmp.eq.s32.totalorder %s25, 0
      %p141 = por %p139, %p140
      %p142 = scmp.ne.s32.totalorder %s128, %s129
      %p143 = scmp.eq.s32.totalorder %s26, 5
      %p144 = por %p142, %p143
      %p146 = scmp.ne.s32.totalorder %s129, %s145
      %p147 = scmp.eq.s32.totalorder %s26, 0
      %p148 = por %p146, %p147
      %s150 = sadd.s32 %s149, 1
      %p153 = scmp.eq.s32.totalorder %s20, 5
      %p154 = scmp.ne.s32.totalorder %s149, %s151
      %p155 = scmp.eq.s32.totalorder %s20, 0
      %p156 = por %p154, %p155
      %p157 = scmp.ne.s32.totalorder %s149, %s151
      %p158 = scmp.eq.s32.totalorder %s25, 5
      %p159 = por %p157, %p158
      %p160 = scmp.ne.s32.totalorder %s151, %s152
      %p161 = scmp.eq.s32.totalorder %s25, 0
      %p162 = por %p160, %p161
      %p163 = scmp.ne.s32.totalorder %s151, %s152
      %p164 = scmp.eq.s32.totalorder %s26, 5
      %p165 = por %p163, %p164
      %p167 = scmp.ne.s32.totalorder %s152, %s166
      %p168 = scmp.eq.s32.totalorder %s26, 0
      %p169 = por %p167, %p168
      %s171 = sadd.s32 %s170, 1
      %p174 = scmp.eq.s32.totalorder %s20, 5
      %p175 = scmp.ne.s32.totalorder %s170, %s172
      %p176 = scmp.eq.s32.totalorder %s20, 0
      %p177 = por %p175, %p176
      %p178 = scmp.ne.s32.totalorder %s170, %s172
      %p179 = scmp.eq.s32.totalorder %s25, 5
      %p180 = por %p178, %p179
      %p181 = scmp.ne.s32.totalorder %s172, %s173
      %p182 = scmp.eq.s32.totalorder %s25, 0
      %p183 = por %p181, %p182
      %p184 = scmp.ne.s32.totalorder %s172, %s173
      %p185 = scmp.eq.s32.totalorder %s26, 5
      %p186 = por %p184, %p185
      %p188 = scmp.ne.s32.totalorder %s173, %s187
      %p189 = scmp.eq.s32.totalorder %s26, 0
      %p190 = por %p188, %p189
      %s191 = ssub.s32 %s28, %s42
      %s192 = ssub.s32 %s29, %s38
      %s193 = sor.u32 %s191, %s192
      %s194 = ssub.s32 %s27, %s46
      %s195 = sor.u32 %s193, %s194
      %p196 = scmp.eq.s32.totalorder %s195, 0
      %s198 = sadd.s32 %s197, 1
      %s199 = scalar_select %p196, %s197, %s198
      %p202 = pneg %p196
      %p203 = scmp.eq.s32.totalorder %s20, 5
      %p204 = por %p202, %p203
      %p205 = scmp.ne.s32.totalorder %s197, %s200
      %p206 = scmp.eq.s32.totalorder %s20, 0
      %p207 = por %p205, %p206
      %p208 = scmp.ne.s32.totalorder %s197, %s200
      %p209 = scmp.eq.s32.totalorder %s25, 5
      %p210 = por %p208, %p209
      %p211 = scmp.ne.s32.totalorder %s200, %s201
      %p212 = scmp.eq.s32.totalorder %s25, 0
      %p213 = por %p211, %p212
      %p214 = scmp.ne.s32.totalorder %s200, %s201
      %p215 = scmp.eq.s32.totalorder %s26, 5
      %p216 = por %p214, %p215
      %p218 = scmp.ne.s32.totalorder %s201, %s217
      %p219 = scmp.eq.s32.totalorder %s26, 0
      %p220 = por %p218, %p219
      %p221 = scmp.le.s32.totalorder 1, %s20
      %p222 = scmp.lt.s32.totalorder %s20, 7
      %p223 = pnand %p221, %p222
      %p224 = pneg %p223
      // Predicated region
      $region9: #{tpu_custom_call.1} parent=5 // pred_check
        _
      $region10: #{tpu_custom_call.1} parent=5 // pred_check_branch
        %226 = sbr.rel (%p223) target = $region12
      $region11: #{tpu_custom_call.1} parent=5 // pred_region
        %s227 = ssub.s32 %s20, 1
        // Predicated region
        $region13: #{tpu_custom_call.1} parent=11 // pred_check
          %p228 = pneg %p162
        $region14: #{tpu_custom_call.1} parent=11 // pred_check_branch
          %230 = sbr.rel (%p228) target = $region16
        $region15: #{tpu_custom_call.1} parent=11 // pred_region
          _
        $region16: #{tpu_custom_call.1} parent=11 // pred_fallthru
          _
        // Predicated region
        $region17: #{tpu_custom_call.1} parent=11 // pred_check
          %p231 = pneg %p183
        $region18: #{tpu_custom_call.1} parent=11 // pred_check_branch
          %233 = sbr.rel (%p231) target = $region20
        $region19: #{tpu_custom_call.1} parent=11 // pred_region
          _
        $region20: #{tpu_custom_call.1} parent=11 // pred_fallthru
          _
      $region12: #{tpu_custom_call.1} parent=5 // pred_fallthru
        _
      %p234 = scmp.lt.s32.totalorder %s20, 6
      // Predicated region
      $region21: #{tpu_custom_call.1} parent=5 // pred_check
        %p235 = pneg %p234
      $region22: #{tpu_custom_call.1} parent=5 // pred_check_branch
        %237 = sbr.rel (%p235) target = $region24
      $region23: #{tpu_custom_call.1} parent=5 // pred_region
        // Predicated region
        $region25: #{tpu_custom_call.1} parent=23 // pred_check
          %p238 = pneg %p63
        $region26: #{tpu_custom_call.1} parent=23 // pred_check_branch
          %240 = sbr.rel (%p238) target = $region28
        $region27: #{tpu_custom_call.1} parent=23 // pred_region
          %s241 = sand.u32 %s53, 1
          %s242 = scalar_lea.sflag [#allocation3], %s241
          %s243 = sand.u32 %s53, 1
          %s244 = smul.addr %s243, 64
          %s245 = scalar_lea.vmem [#allocation2], %s244
          %s246 = smul.u32 2, %s27
          %s248 = ssub.s32 1024, 1024
          %249 = vsyncadd %s242, %s248
          %s250 = smul.addr %s29, 8
          %s251 = sadd.s32 %s246, %s250
          %s252 = smul.addr %s28, 24
          %s253 = sadd.s32 %s251, %s252
          %s254 = smul.addr %s253, 128
          %s255 = scalar_lea.hbm %s0, %s254
          %s256 = sshll.u32 %s245, 4
          %s257 = int_to_ptr.vmem [resolvable:$true] %s256
          %262 = dma.hbm_to_vmem [thread:$0]  %s255, 1024, %s257, %s242, 256, 256, 16
        $region28: #{tpu_custom_call.1} parent=23 // pred_fallthru
          _
        // Predicated region
        $region29: #{tpu_custom_call.1} parent=23 // pred_check
          %p263 = pneg %p99
        $region30: #{tpu_custom_call.1} parent=23 // pred_check_branch
          %265 = sbr.rel (%p263) target = $region32
        $region31: #{tpu_custom_call.1} parent=23 // pred_region
          %s266 = sand.u32 %s20, 1
          %s267 = scalar_lea.sflag [#allocation6], %s266
          %s268 = sand.u32 %s89, 1
          %s269 = smul.addr %s268, 64
          %s270 = scalar_lea.vmem [#allocation5], %s269
          %s271 = sadd.s32 %s29, 1
          %p272 = scmp.lt.s32.totalorder %s271, 2
          %s273 = scalar_select %p272, %s271, 2
          %s274 = smul.u32 2, %s27
          %s276 = ssub.s32 1024, 1024
          %277 = vsyncadd %s267, %s276
          %s278 = smul.addr %s273, 8
          %s279 = sadd.s32 %s274, %s278
          %s280 = smul.addr %s28, 24
          %s281 = sadd.s32 %s279, %s280
          %s282 = smul.addr %s281, 128
          %s283 = scalar_lea.hbm %s1, %s282
          %s284 = sshll.u32 %s270, 4
          %s285 = int_to_ptr.vmem [resolvable:$true] %s284
          %290 = dma.hbm_to_vmem [thread:$0]  %s283, 1024, %s285, %s267, 256, 256, 16
        $region32: #{tpu_custom_call.1} parent=23 // pred_fallthru
          _
        // Predicated region
        $region33: #{tpu_custom_call.1} parent=23 // pred_check
          %p291 = pneg %p135
        $region34: #{tpu_custom_call.1} parent=23 // pred_check_branch
          %293 = sbr.rel (%p291) target = $region36
        $region35: #{tpu_custom_call.1} parent=23 // pred_region
          %s294 = sand.u32 %s20, 1
          %s295 = scalar_lea.sflag [#allocation6], %s294
          %s296 = sand.u32 %s125, 1
          %s297 = smul.addr %s296, 64
          %s298 = scalar_lea.vmem [#allocation7], %s297
          %s299 = ssub.s32 %s29, 1
          %p300 = scmp.gt.s32.totalorder %s299, 0
          %s301 = scalar_select %p300, %s299, 0
          %s302 = smul.u32 2, %s27
          %s304 = ssub.s32 1024, 1024
          %305 = vsyncadd %s295, %s304
          %s306 = smul.addr %s301, 8
          %s307 = sadd.s32 %s302, %s306
          %s308 = smul.addr %s28, 24
          %s309 = sadd.s32 %s307, %s308
          %s310 = smul.addr %s309, 128
          %s311 = scalar_lea.hbm %s2, %s310
          %s312 = sshll.u32 %s298, 4
          %s313 = int_to_ptr.vmem [resolvable:$true] %s312
          %318 = dma.hbm_to_vmem [thread:$0]  %s311, 1024, %s313, %s295, 256, 256, 16
        $region36: #{tpu_custom_call.1} parent=23 // pred_fallthru
          _
      $region24: #{tpu_custom_call.1} parent=5 // pred_fallthru
        _
      %p319 = scmp.le.s32.totalorder 1, %s20
      %p320 = scmp.lt.s32.totalorder %s20, 7
      %p321 = pnand %p319, %p320
      %p322 = pneg %p321
      // Predicated region
      $region37: #{tpu_custom_call.1} parent=5 // pred_check
        _
      $region38: #{tpu_custom_call.1} parent=5 // pred_check_branch
        %324 = sbr.rel (%p321) target = $region40
      $region39: #{tpu_custom_call.1} parent=5 // pred_region
        %s325 = ssub.s32 %s20, 1
        %s326 = sand.u32 %s56, 1
        %s327 = scalar_lea.sflag [#allocation3], %s326
        %s328 = sand.u32 %s56, 1
        %s329 = smul.addr %s328, 64
        %s330 = scalar_lea.vmem [#allocation2], %s329
        // Predicated region
        $region41: #{tpu_custom_call.1} parent=39 // pred_check
          %p331 = pneg %p69
        $region42: #{tpu_custom_call.1} parent=39 // pred_check_branch
          %333 = sbr.rel (%p331) target = $region44
        $region43: #{tpu_custom_call.1} parent=39 // pred_region
          %334 = dma.done %s327, 1024
        $region44: #{tpu_custom_call.1} parent=39 // pred_fallthru
          _
        %s335 = sand.u32 %s25, 1
        %s336 = scalar_lea.sflag [#allocation6], %s335
        %s337 = sand.u32 %s92, 1
        %s338 = smul.addr %s337, 64
        %s339 = scalar_lea.vmem [#allocation5], %s338
        // Predicated region
        $region45: #{tpu_custom_call.1} parent=39 // pred_check
          %p340 = pneg %p105
        $region46: #{tpu_custom_call.1} parent=39 // pred_check_branch
          %342 = sbr.rel (%p340) target = $region48
        $region47: #{tpu_custom_call.1} parent=39 // pred_region
          %343 = dma.done %s336, 1024
        $region48: #{tpu_custom_call.1} parent=39 // pred_fallthru
          _
        %s344 = sand.u32 %s25, 1
        %s345 = scalar_lea.sflag [#allocation6], %s344
        %s346 = sand.u32 %s128, 1
        %s347 = smul.addr %s346, 64
        %s348 = scalar_lea.vmem [#allocation7], %s347
        // Predicated region
        $region49: #{tpu_custom_call.1} parent=39 // pred_check
          %p349 = pneg %p141
        $region50: #{tpu_custom_call.1} parent=39 // pred_check_branch
          %351 = sbr.rel (%p349) target = $region52
        $region51: #{tpu_custom_call.1} parent=39 // pred_region
          %352 = dma.done %s345, 1024
        $region52: #{tpu_custom_call.1} parent=39 // pred_fallthru
          _
        %s353 = sand.u32 %s56, 1
        %s354 = scalar_lea.sflag [#allocation3], %s353
        %s355 = sand.u32 %s56, 1
        %s356 = smul.addr %s355, 64
        %s357 = scalar_lea.vmem [#allocation2], %s356
        %p358 = pneg %p69
        %p359 = pneg %p66
        %s360 = sand.u32 %s25, 1
        %s361 = scalar_lea.sflag [#allocation6], %s360
        %s362 = sand.u32 %s92, 1
        %s363 = smul.addr %s362, 64
        %s364 = scalar_lea.vmem [#allocation5], %s363
        %p365 = pneg %p105
        %p366 = pneg %p102
        %s367 = sand.u32 %s25, 1
        %s368 = scalar_lea.sflag [#allocation6], %s367
        %s369 = sand.u32 %s128, 1
        %s370 = smul.addr %s369, 64
        %s371 = scalar_lea.vmem [#allocation7], %s370
        %p372 = pneg %p141
        %p373 = pneg %p138
        %p374 = pneg %p162
        %p375 = pneg %p159
        %p376 = pneg %p183
        %p377 = pneg %p180
        %p378 = pneg %p213
        %p379 = pneg %p210
        %s380 = sand.u32 %s200, 1
        %s381 = scalar_lea.sflag [#allocation4], %s380
        %s382 = sand.u32 %s200, 1
        %s383 = smul.addr %s382, 64
        %s384 = scalar_lea.vmem [#allocation8], %s383
        %s385 = smul.u32 2, %s30
        %s386 = sadd.s32 %s32, 1
        %p387 = scmp.lt.s32.totalorder %s386, 2
        %s388 = scalar_select %p387, %s386, 2
        %s389 = smul.u32 2, %s30
        %s390 = ssub.s32 %s32, 1
        %p391 = scmp.gt.s32.totalorder %s390, 0
        %s392 = scalar_select %p391, %s390, 0
        %s393 = smul.u32 2, %s30
        %s394 = smul.u32 2, %s30
        %v395 = vld [vmem:[%s330] sm:$0xff]
        %v396 = vld [vmem:[%s330 + $0x8] sm:$0xff]
        %v397 = vld [vmem:[%s330 + $0x10] sm:$0xff]
        %v398 = vld [vmem:[%s330 + $0x18] sm:$0xff]
        %v399 = vld [vmem:[%s330 + $0x20] sm:$0xff]
        %v400 = vld [vmem:[%s330 + $0x28] sm:$0xff]
        %v401 = vld [vmem:[%s330 + $0x30] sm:$0xff]
        %v402 = vld [vmem:[%s330 + $0x38] sm:$0xff]
        %v403 = vld [vmem:[%s339] sm:$0xff]
        %v404 = vld [vmem:[%s339 + $0x8] sm:$0xff]
        %v405 = vld [vmem:[%s339 + $0x10] sm:$0xff]
        %v406 = vld [vmem:[%s339 + $0x18] sm:$0xff]
        %v407 = vld [vmem:[%s339 + $0x20] sm:$0xff]
        %v408 = vld [vmem:[%s339 + $0x28] sm:$0xff]
        %v409 = vld [vmem:[%s339 + $0x30] sm:$0xff]
        %v410 = vld [vmem:[%s339 + $0x38] sm:$0xff]
        %v411 = vld [vmem:[%s348] sm:$0xff]
        %v412 = vld [vmem:[%s348 + $0x8] sm:$0xff]
        %v413 = vld [vmem:[%s348 + $0x10] sm:$0xff]
        %v414 = vld [vmem:[%s348 + $0x18] sm:$0xff]
        %v415 = vld [vmem:[%s348 + $0x20] sm:$0xff]
        %v416 = vld [vmem:[%s348 + $0x28] sm:$0xff]
        %v417 = vld [vmem:[%s348 + $0x30] sm:$0xff]
        %v418 = vld [vmem:[%s348 + $0x38] sm:$0xff]
        %v419 = vlaneseq
        %v420 = vshrl.u32 %v419, 7
        %v421 = vadd.s32 %v420, 8
        %v422 = vadd.s32 %v420, 16
        %v423 = vadd.s32 %v420, 24
        %vm424 = vcmp.lt.s32.totalorder %v420, 4
        %vm425 = vcmp.lt.s32.totalorder %v421, 4
        %vm426 = vcmp.lt.s32.totalorder %v422, 4
        %vm427 = vcmp.lt.s32.totalorder %v423, 4
        %vm428 = vcmp.ge.s32.totalorder %v420, 4
        %vm429 = vcmp.ge.s32.totalorder %v421, 4
        %vm430 = vcmp.ge.s32.totalorder %v422, 4
        %vm431 = vcmp.ge.s32.totalorder %v423, 4
        %vm432 = vcmp.lt.s32.totalorder %v420, 8
        %vm433 = vcmp.lt.s32.totalorder %v421, 8
        %vm434 = vcmp.lt.s32.totalorder %v422, 8
        %vm435 = vcmp.lt.s32.totalorder %v423, 8
        %vm436 = vmand %vm428, %vm432
        %vm437 = vmand %vm429, %vm433
        %vm438 = vmand %vm430, %vm434
        %vm439 = vmand %vm431, %vm435
        %p440 = scmp.lt.s32.totalorder %s32, 2
        %s441 = scalar_select %p440, 1, 0
        %v442 = vstv %s441
        %vm443 = vcmp.eq.s32.totalorder %v442, 1
        %v444 = vsel %vm443, %v403, 0.0
        %v445 = vsel %vm443, %v404, 0.0
        %v446 = vsel %vm443, %v405, 0.0
        %v447 = vsel %vm443, %v406, 0.0
        %v448 = vsel %vm443, %v407, 0.0
        %v449 = vsel %vm443, %v408, 0.0
        %v450 = vsel %vm443, %v409, 0.0
        %v451 = vsel %vm443, %v410, 0.0
        %p452 = scmp.gt.s32.totalorder %s32, 0
        %s453 = scalar_select %p452, 1, 0
        %v454 = vstv %s453
        %vm455 = vcmp.eq.s32.totalorder %v454, 1
        %v456 = vsel %vm455, %v411, 0.0
        %v457 = vsel %vm455, %v412, 0.0
        %v458 = vsel %vm455, %v413, 0.0
        %v459 = vsel %vm455, %v414, 0.0
        %v460 = vsel %vm455, %v415, 0.0
        %v461 = vsel %vm455, %v416, 0.0
        %v462 = vsel %vm455, %v417, 0.0
        %v463 = vsel %vm455, %v418, 0.0
        %v464 = vsel %vm436, %v456, %v395
        %v465 = vsel %vm436, %v457, %v396
        %v466 = vsel %vm437, %v458, %v397
        %v467 = vsel %vm437, %v459, %v398
        %v468 = vsel %vm438, %v460, %v399
        %v469 = vsel %vm438, %v461, %v400
        %v470 = vsel %vm439, %v462, %v401
        %v471 = vsel %vm439, %v463, %v402
        %v472 = vsel %vm424, %v444, %v464
        %v473 = vsel %vm424, %v445, %v465
        %v474 = vsel %vm425, %v446, %v466
        %v475 = vsel %vm425, %v447, %v467
        %v476 = vsel %vm426, %v448, %v468
        %v477 = vsel %vm426, %v449, %v469
        %v478 = vsel %vm427, %v450, %v470
        %v479 = vsel %vm427, %v451, %v471
        %v480 = vld [vmem:[%s3] sm:$0xff]
        %v481 = vld [vmem:[%s3 + $0x8] sm:$0xff]
        %v482 = vld [vmem:[%s3 + $0x10] sm:$0xff]
        %v483 = vld [vmem:[%s3 + $0x18] sm:$0xff]
        %v484 = vld [vmem:[%s4] sm:$0xff]
        %v485 = vld [vmem:[%s4 + $0x8] sm:$0xff]
        %v486 = vld [vmem:[%s4 + $0x10] sm:$0xff]
        %v487 = vld [vmem:[%s4 + $0x18] sm:$0xff]
        %489 = vset.pattern.permute.xlu0 0
        %490 = vperm.xlu0 %489, %v484
        %v491 = vpop.permute.xlu0 %490
        %494 = vset.pattern.permute.xlu0 0
        %495 = vperm.xlu0 %494, %v485
        %v496 = vpop.permute.xlu0 %495
        %499 = vset.pattern.permute.xlu0 0
        %500 = vperm.xlu0 %499, %v486
        %v501 = vpop.permute.xlu0 %500
        %504 = vset.pattern.permute.xlu0 0
        %505 = vperm.xlu0 %504, %v487
        %v506 = vpop.permute.xlu0 %505
        %vm508 = vcmask 261120
        %v510 = vsel %vm508, %v480, 0
        %v513 = vsel %vm508, %v481, 0
        %v516 = vsel %vm508, %v482, 0
        %v519 = vsel %vm508, %v483, 0
        %521 = vmatprep.subr.mxu0 %v473
        %522 = vmatpush1.msra.mxu0 %v472
        %523 = vmatprep.subr.mxu0 %v475
        %524 = vmatpush1.msra.mxu0 %v474
        %525 = vmatprep.subr.mxu0 %v477
        %526 = vmatpush1.msra.mxu0 %v476
        %527 = vmatprep.subr.mxu0 %v479
        %528 = vmatpush1.msra.mxu0 %v478
        %529 = vmatprep.subr.mxu0 0.0
        %530 = vmatpush1.msra.mxu0 0.0
        %531 = vmatprep.subr.mxu0 0.0
        %532 = vmatpush1.msra.mxu0 0.0
        %533 = vmatprep.subr.mxu0 0.0
        %534 = vmatpush1.msra.mxu0 0.0
        %535 = vmatprep.subr.mxu0 0.0
        %536 = vmatpush1.msra.mxu0 0.0
        %537 = vmatprep.subr.mxu0 0.0
        %538 = vmatpush1.msra.mxu0 0.0
        %539 = vmatprep.subr.mxu0 0.0
        %540 = vmatpush1.msra.mxu0 0.0
        %541 = vmatprep.subr.mxu0 0.0
        %542 = vmatpush1.msra.mxu0 0.0
        %543 = vmatprep.subr.mxu0 0.0
        %544 = vmatpush1.msra.mxu0 0.0
        %545 = vmatprep.subr.mxu0 0.0
        %546 = vmatpush1.msra.mxu0 0.0
        %547 = vmatprep.subr.mxu0 0.0
        %548 = vmatpush1.msra.mxu0 0.0
        %549 = vmatprep.subr.mxu0 0.0
        %550 = vmatpush1.msra.mxu0 0.0
        %551 = vmatprep.subr.mxu0 0.0
        %552 = vmatpush1.msra.mxu0 0.0
        %553 = vmatprep.subr.mxu0 0.0
        %554 = vmatpush1.msra.mxu0 0.0
        %555 = vmatprep.subr.mxu0 0.0
        %556 = vmatpush1.msra.mxu0 0.0
        %557 = vmatprep.subr.mxu0 0.0
        %558 = vmatpush1.msra.mxu0 0.0
        %559 = vmatprep.subr.mxu0 0.0
        %560 = vmatpush1.msra.mxu0 0.0
        %561 = vmatprep.subr.mxu0 0.0
        %562 = vmatpush1.msra.mxu0 0.0
        %563 = vmatprep.subr.mxu0 0.0
        %564 = vmatpush1.msra.mxu0 0.0
        %565 = vmatprep.subr.mxu0 0.0
        %566 = vmatpush1.msra.mxu0 0.0
        %567 = vmatprep.subr.mxu0 0.0
        %568 = vmatpush1.msra.mxu0 0.0
        %569 = vmatprep.subr.mxu0 0.0
        %570 = vmatpush1.msra.mxu0 0.0
        %571 = vmatprep.subr.mxu0 0.0
        %572 = vmatpush1.msra.mxu0 0.0
        %573 = vmatprep.subr.mxu0 0.0
        %574 = vmatpush1.msra.mxu0 0.0
        %575 = vmatprep.subr.mxu0 0.0
        %576 = vmatpush1.msra.mxu0 0.0
        %577 = vmatprep.subr.mxu0 0.0
        %578 = vmatpush1.msra.mxu0 0.0
        %579 = vmatprep.subr.mxu0 0.0
        %580 = vmatpush1.msra.mxu0 0.0
        %581 = vmatprep.subr.mxu0 0.0
        %582 = vmatpush1.msra.mxu0 0.0
        %583 = vmatprep.subr.mxu0 0.0
        %584 = vmatpush1.msra.mxu0 0.0
        %585 = vmatprep.mubr.f32.mxu0 0.0
        %586 = vmatmul.mubr.f32.gmra.mrb[0].mxu0 %v510
        %v587 = vpop.f32.mrb[0].mxu0
        %v588 = vadd.f32 %v491, %v587
        %v589 = vpop.f32.mrb[0].mxu0
        %v590 = vadd.f32 %v491, %v589
        %591 = vmatprep.mubr.f32.mxu0 0.0
        %592 = vmatmul.mubr.f32.gmra.mrb[0].mxu0 %v513
        %v593 = vpop.f32.mrb[0].mxu0
        %v594 = vadd.f32 %v496, %v593
        %v595 = vpop.f32.mrb[0].mxu0
        %v596 = vadd.f32 %v496, %v595
        %597 = vmatprep.mubr.f32.mxu0 0.0
        %598 = vmatmul.mubr.f32.gmra.mrb[0].mxu0 %v516
        %v599 = vpop.f32.mrb[0].mxu0
        %v600 = vadd.f32 %v501, %v599
        %v601 = vpop.f32.mrb[0].mxu0
        %v602 = vadd.f32 %v501, %v601
        %603 = vmatprep.mubr.f32.mxu0 0.0
        %604 = vmatmul.mubr.f32.gmra.mrb[0].mxu0 %v519
        %v605 = vpop.f32.mrb[0].mxu0
        %v606 = vadd.f32 %v506, %v605
        %v607 = vpop.f32.mrb[0].mxu0
        %v608 = vadd.f32 %v506, %v607
        %609 = vdwg.mxu0
        %610 = vst [vmem:[%s384] sm:$0xff] %v588
        %611 = vst [vmem:[%s384 + $0x8] sm:$0xff] %v590
        %612 = vst [vmem:[%s384 + $0x10] sm:$0xff] %v594
        %613 = vst [vmem:[%s384 + $0x18] sm:$0xff] %v596
        %614 = vst [vmem:[%s384 + $0x20] sm:$0xff] %v600
        %615 = vst [vmem:[%s384 + $0x28] sm:$0xff] %v602
        %616 = vst [vmem:[%s384 + $0x30] sm:$0xff] %v606
        %617 = vst [vmem:[%s384 + $0x38] sm:$0xff] %v608
        %s618 = sand.u32 %s200, 1
        %s619 = scalar_lea.sflag [#allocation4], %s618
        %s620 = sand.u32 %s200, 1
        %s621 = smul.addr %s620, 64
        %s622 = scalar_lea.vmem [#allocation8], %s621
        // Predicated region
        $region53: #{tpu_custom_call.1} parent=39 // pred_check
          %p623 = pneg %p210
        $region54: #{tpu_custom_call.1} parent=39 // pred_check_branch
          %625 = sbr.rel (%p623) target = $region56
        $region55: #{tpu_custom_call.1} parent=39 // pred_region
          %s626 = smul.u32 2, %s30
          %s628 = ssub.s32 1024, 1024
          %629 = vsyncadd %s619, %s628
          %s630 = smul.addr %s32, 8
          %s631 = sadd.s32 %s626, %s630
          %s632 = smul.addr %s31, 24
          %s633 = sadd.s32 %s631, %s632
          %s634 = smul.addr %s633, 128
          %s635 = scalar_lea.hbm %s5, %s634
          %s636 = sshll.u32 %s622, 4
          %s637 = int_to_ptr.vmem [resolvable:$true] %s636
          %642 = dma.vmem_to_hbm [thread:$0]  %s637, 1024, %s635, %s619, 256, 256, 16
        $region56: #{tpu_custom_call.1} parent=39 // pred_fallthru
          _
      $region40: #{tpu_custom_call.1} parent=5 // pred_fallthru
        _
      %p643 = scmp.le.s32.totalorder 2, %s20
      // Predicated region
      $region57: #{tpu_custom_call.1} parent=5 // pred_check
        %p644 = pneg %p643
      $region58: #{tpu_custom_call.1} parent=5 // pred_check_branch
        %646 = sbr.rel (%p644) target = $region60
      $region59: #{tpu_custom_call.1} parent=5 // pred_region
        %s647 = ssub.s32 %s20, 2
        // Predicated region
        $region61: #{tpu_custom_call.1} parent=59 // pred_check
          %p648 = pneg %p216
        $region62: #{tpu_custom_call.1} parent=59 // pred_check_branch
          %650 = sbr.rel (%p648) target = $region64
        $region63: #{tpu_custom_call.1} parent=59 // pred_region
          %s651 = sand.u32 %s201, 1
          %s652 = scalar_lea.sflag [#allocation4], %s651
          %s653 = sand.u32 %s201, 1
          %s654 = smul.addr %s653, 64
          %s655 = scalar_lea.vmem [#allocation8], %s654
          %656 = dma.done %s652, 1024
        $region64: #{tpu_custom_call.1} parent=59 // pred_fallthru
          _
      $region60: #{tpu_custom_call.1} parent=5 // pred_fallthru
        _
    $region6: #{tpu_custom_call.1} parent=1 // loop_footer
      %s24 = sadd.s32 1, %s20
    $region7: #{tpu_custom_call.1} parent=1 // loop_footer_branch
      %19 = sbr.rel target = $region3
    $region8: #{tpu_custom_call.1} parent=1 // loop_exit
      _
    %657 = vsyncpa [#allocation3], 1
    %s658 = scalar_lea.sflag [#allocation3], 1
    %659 = vsyncpa %s658, 1
    %660 = vsyncpa [#allocation6], 1
    %s661 = scalar_lea.sflag [#allocation6], 1
    %662 = vsyncpa %s661, 1
    %663 = vsyncpa [#allocation4], 1
    %s664 = scalar_lea.sflag [#allocation4], 1
    %665 = vsyncpa %s664, 1

</llo_original>
